<compile_context>
chip_gen: v5e
topology: v5e:2x2
jax: 0.10.0
libtpu: 0.0.40
codegen_flags: <defaults>
</compile_context>

<pallas_src>
import jax
import jax.numpy as jnp
from jax.experimental import pallas as pl
from jax.experimental.pallas import tpu as pltpu


def _dense_mask_copy_kernel(mask_hbm_ref, out_hbm_ref, dma_sem):
    # Single direct HBM->HBM DMA of the whole mask; no VMEM staging, no grid.
    cp = pltpu.make_async_copy(mask_hbm_ref, out_hbm_ref, dma_sem)
    cp.start()
    cp.wait()


def dense_mask2d_forward(mask: jax.Array, *, materialize: bool = False) -> jax.Array:
    """Pallas implementation of DenseMask2D.forward(): returns the mask.

    materialize=False (default): true identity -- no kernel, no HBM traffic.
    materialize=True: produce a distinct output buffer via one HBM->HBM DMA.
    """
    if not materialize:
        # Identity path: semantically what the PyTorch module does (it returns
        # the parameter itself).  Zero-cost; this is the hot path.
        return mask

    return pl.pallas_call(
        _dense_mask_copy_kernel,
        out_shape=jax.ShapeDtypeStruct(mask.shape, mask.dtype),
        in_specs=[pl.BlockSpec(memory_space=pl.ANY)],   # raw HBM ref, no auto-DMA
        out_specs=pl.BlockSpec(memory_space=pl.ANY),    # raw HBM ref, no auto-DMA
        scratch_shapes=[pltpu.SemaphoreType.DMA],
    )(mask)


class DenseMask2D:
    """JAX mirror of the PyTorch module; parameter initialized in-script."""

    def __init__(self, in_features: int, out_features: int) -> None:
        self.in_features = in_features
        self.out_features = out_features
        # init.constant_(mask, 1.0)
        self.mask = jnp.ones((out_features, in_features), dtype=jnp.float32)

    def __call__(self, materialize: bool = False) -> jax.Array:
        return dense_mask2d_forward(self.mask, materialize=materialize)


if __name__ == "__main__":
    # Deterministic setup. PRNGKey(0) created for protocol consistency; the
    # module's parameter is deterministically all-ones by definition.
    _ = jax.random.PRNGKey(0)

    in_features, out_features = 16, 8
    module = DenseMask2D(in_features, out_features)

    # Default (optimized) identity path: no data movement at all.
    out_identity = module()
    out_identity = jax.block_until_ready(out_identity)
    assert out_identity.shape == (out_features, in_features)
    assert out_identity.dtype == jnp.float32
    assert bool(jnp.all(out_identity == 1.0))

    # Explicitly materialized path: exercise the Pallas HBM->HBM copy kernel.
    out_copy = module(materialize=True)
    out_copy = jax.block_until_ready(out_copy)
    assert out_copy.shape == (out_features, in_features)
    assert out_copy.dtype == jnp.float32
    assert bool(jnp.array_equal(out_copy, module.mask))

    print("KERNEL_OK")
</pallas_src>

<mosaic_0001>
module attributes {stable_mosaic.version = 11 : i64} {
  func.func @_dense_mask_copy_kernel(%arg0: memref<8x16xf32, #tpu.memory_space<any>>, %arg1: memref<8x16xf32, #tpu.memory_space<any>>, %arg2: memref<!tpu.dma_semaphore, #tpu.memory_space<semaphore_mem>>) attributes {dimension_semantics = [], scalar_prefetch = 0 : i64, scratch_operands = 1 : i64, tpu.core_type = #tpu.core_type<tc>} {
    tpu.enqueue_dma source(%arg0 : memref<8x16xf32, #tpu.memory_space<any>>) target(%arg1 : memref<8x16xf32, #tpu.memory_space<any>>) target_semaphore(%arg2 : memref<!tpu.dma_semaphore, #tpu.memory_space<semaphore_mem>>)
    tpu.wait_dma2 semaphore(%arg2 : memref<!tpu.dma_semaphore, #tpu.memory_space<semaphore_mem>>) src(%arg0 : memref<8x16xf32, #tpu.memory_space<any>>) dst(%arg1 : memref<8x16xf32, #tpu.memory_space<any>>)
    return
  }
}

</mosaic_0001>

<llo_original>
// kernel: tpu_custom_call.1
$region0: #{tpu_custom_call.1}
  #allocation0 [shape = 'u32[]', space=smem, size = 0x4, offset = 0x4, fixed_abs, tag = 'smem constant byte address 0x4 - core index']
  #allocation1 [shape = 'u32[72,128]{1,0:T(1,128)}', space=vmem, size = 0x9000, scoped, tag = 'internal scratch']
  #allocation2 [shape = 's32[1]{0}', space=sflag, size = 0x4, scoped, tag = 'scratch operand']
  #allocation3 [shape = 's32[]', space=sflag, size = 0x4, offset = 0, fixed_abs, tag = 'sflag constant byte address 0x0 - dummy sync flag']
  #allocation4 [shape = 'u32[0]{0}', space=smem, size = 0, offset = 0, fixed_abs, tag = 'smem constant byte address 0x0 - null']
  %s0 = inlined_call_operand.hbm [shape: f32[8,16], index: 0, kind: input, shape index: {}]
  %s1 = inlined_call_operand.hbm [shape: f32[8,16], index: 1, kind: output, shape index: {}]
  %s2 = sld [smem:[#allocation0]]
  $region2: #{tpu_custom_call.1} parent=0
    _
  %s4 = ssub.s32 1, %s2
  %s5 = scalar_select 0, %s4, %s2
  %s7 = sshll.u32 1, 14
  %s8 = sxor.u32 4294967295, %s7
  %s10 = sshll.u32 %s0, 4
  %s11 = int_to_ptr.hbm [resolvable:$true] %s10
  %s12 = sshll.u32 %s1, 4
  %s13 = int_to_ptr.hbm [resolvable:$true] %s12
  %16 = dma.general %s11, 128, %s13, [#allocation2], [#allocation3], [#allocation4], 0, 0
  %s17 = smul.u32 8, 1
  %s18 = sshll.u32 %s17, 4
  %19 = dma.done [#allocation2], %s18
  %20 = vsyncmov [#allocation2]
  %s21 = vpop.sfrf %20
  %p22 = scmp.eq.s32.totalorder %s21, 0
  %p23 = pneg %p22
  %25 = shalt.err (%p23)

</llo_original>
